<compile_context>
chip_gen: v7x
topology: tpu7x:2x2x1
jax: 0.10.0
libtpu: 0.0.40
codegen_flags: <defaults>
</compile_context>

<pallas_src>
import numpy as np
import jax
import jax.numpy as jnp
from jax.experimental import pallas as pl
from jax.experimental.pallas import tpu as pltpu


def _make_plreg_kernel(k_axis):
    """Kernel: accumulate partial grads = noise_tile @ w_tile^T over the D axis.

    noise_ref: (N, tk) f32   w_ref: (S, tk) f32   acc_ref: (N, S) f32 (resident).
    `k_axis` is which grid axis is the reduction axis (last).
    """
    def kernel(noise_ref, w_ref, acc_ref):
        @pl.when(pl.program_id(k_axis) == 0)
        def _():
            acc_ref[...] = jnp.zeros_like(acc_ref)

        acc_ref[...] += jax.lax.dot_general(
            noise_ref[...], w_ref[...],
            dimension_numbers=(((1,), (1,)), ((), ())),   # contract both on D tile
            preferred_element_type=jnp.float32)
    return kernel


def _tpu_topology():
    """(num_tensorcores, vmem_capacity_bytes) with conservative fallbacks."""
    cores, vmem = 1, 64 << 20          # safe even on v7x (64 MiB / TC)
    try:
        info = pltpu.get_tpu_info()
        for attr in ("vmem_capacity_bytes", "vmem_bytes", "vmem_size_bytes"):
            v = getattr(info, attr, None)
            if v:
                vmem = int(v)
                break
        for attr in ("num_cores", "core_count", "tensorcore_count",
                     "num_tensorcores", "cores_per_chip"):
            v = getattr(info, attr, None)
            if v:
                cores = int(v)
                break
    except Exception:
        pass
    return max(1, min(int(cores), 2)), int(vmem)


def _choose_tiling(d, tk_cap, num_cores, n, s, vmem_cap_bytes):
    """Pick (num_splits, tk, steps, d_padded).  d_padded = num_splits*steps*tk."""
    num_splits = num_cores if (num_cores > 1 and d >= num_cores * 128) else 1
    # Budget double-buffered f32 (N,tk)+(S,tk) input tiles to ~45% of VMEM capacity.
    col_bytes = (n + s) * 4 * 2
    tk_fit = max(128, ((int(vmem_cap_bytes * 0.45) // col_bytes) // 128) * 128)
    dc = -(-d // num_splits)                       # ceil(D / splits)
    dc_rounded = -(-dc // 128) * 128
    tk = max(128, (min(tk_cap, tk_fit, dc_rounded) // 128) * 128)
    steps = -(-dc // tk)
    d_pad = num_splits * steps * tk
    return num_splits, tk, steps, d_pad


def path_length_regularization(fake_imgs, styles, gen_w, pl_ema, noise,
                               decay: float = 0.99, tk_cap: int = 8192):
    """Pallas-accelerated StyleGAN2 path-length regularization.

    fake_imgs : (N, C, H, W)  generator output (shape only; gradient is analytic)
    styles    : (N, S)        latents the gradient is taken w.r.t. (signature parity)
    gen_w     : (S, C*H*W)    weight of the in-script linear generator
    pl_ema    : scalar        EMA buffer (self.pl_ema in the PyTorch module)
    noise     : (N, C, H, W)  the torch.randn_like(fake_imgs) sample

    Returns (penalty, new_pl_ema, grads).
    """
    del styles  # gradient w.r.t. styles is analytic for the linear generator
    N, C, H, W = fake_imgs.shape
    D = C * H * W
    S = gen_w.shape[0]
    scale = np.float32(1.0 / np.sqrt(H * W))       # np.prod(shape[2:]) == H*W

    num_cores, vmem_cap = _tpu_topology()
    num_splits, tk, steps, d_pad = _choose_tiling(D, tk_cap, num_cores, N, S, vmem_cap)

    # Stream f32 directly (no wrapper-side bf16 cast round-trip over HBM).
    noise_flat = noise.reshape(N, D).astype(jnp.float32)
    w = gen_w.astype(jnp.float32)                  # (S, D): no .T materialization
    if d_pad > D:                                  # zero-pad: contraction unchanged
        noise_flat = jnp.pad(noise_flat, ((0, 0), (0, d_pad - D)))
        w = jnp.pad(w, ((0, 0), (0, d_pad - D)))

    # VMEM: double-buffered f32 input tiles + resident f32 output (+ headroom).
    need = 2 * (N + S) * tk * 4 + 2 * N * S * 4 + (4 << 20)
    vmem_limit = int(min(max(need, 32 << 20), vmem_cap - (8 << 20)))

    if num_splits == 1:
        # Single-TensorCore chips (v5e / v6e): plain 1-D reduction grid.
        grid = (steps,)
        in_specs = [pl.BlockSpec((N, tk), lambda k: (0, k)),
                    pl.BlockSpec((S, tk), lambda k: (0, k))]
        out_shape = jax.ShapeDtypeStruct((N, S), jnp.float32)
        out_specs = pl.BlockSpec((N, S), lambda k: (0, 0))
        semantics = ("arbitrary",)
        k_axis = 0
    else:
        # Multi-TC (v7x): leading parallel axis splits D, one partial slab per core.
        grid = (num_splits, steps)
        in_specs = [pl.BlockSpec((N, tk), lambda c, k: (0, c * steps + k)),
                    pl.BlockSpec((S, tk), lambda c, k: (0, c * steps + k))]
        out_shape = jax.ShapeDtypeStruct((num_splits, N, S), jnp.float32)
        out_specs = pl.BlockSpec((pl.Squeezed(), N, S), lambda c, k: (c, 0, 0))
        semantics = ("parallel", "arbitrary")
        k_axis = 1

    partial = pl.pallas_call(
        _make_plreg_kernel(k_axis),
        out_shape=out_shape,
        grid_spec=pltpu.PrefetchScalarGridSpec(
            num_scalar_prefetch=0,
            grid=grid,                             # reduction axis last
            in_specs=in_specs,
            out_specs=out_specs),
        compiler_params=pltpu.CompilerParams(
            dimension_semantics=semantics,
            vmem_limit_bytes=vmem_limit),
    )(noise_flat, w)

    # Tiny O(N*S) epilogue: combine per-core partials (if any), apply the folded
    # scale, then the sqrt / EMA / penalty math of the original module.
    grads = (jnp.sum(partial, axis=0) if num_splits > 1 else partial) * scale
    pl_lengths = jnp.sqrt(jnp.mean(jnp.sum(grads * grads, axis=-1)))
    ema_new = decay * pl_ema + (1.0 - decay) * pl_lengths
    penalty = (pl_lengths - ema_new) ** 2
    return penalty, ema_new, grads


if __name__ == "__main__":
    # Small deterministic problem: batch=8, channels=4, spatial=16x16, style dim=128.
    N, C, H, W, S = 8, 4, 16, 16, 128
    decay = 0.99

    key = jax.random.PRNGKey(0)
    k_styles, k_w, k_noise = jax.random.split(key, 3)

    styles = jax.random.normal(k_styles, (N, S), dtype=jnp.float32)
    gen_w = jax.random.normal(k_w, (S, C * H * W), dtype=jnp.float32) * 0.02
    noise = jax.random.normal(k_noise, (N, C, H, W), dtype=jnp.float32)  # randn_like
    pl_ema = jnp.float32(0.0)                                            # buffer

    # Synthetic differentiable generator producing fake_imgs from styles.
    def generator(s):
        return (s @ gen_w).reshape(N, C, H, W)

    fake_imgs = generator(styles)

    # tk_cap=256 at this toy size exercises the pipelined reduction (multiple steps).
    penalty, ema_new, grads = path_length_regularization(
        fake_imgs, styles, gen_w, pl_ema, noise, decay=decay, tk_cap=256)
    jax.block_until_ready(penalty)

    # Pure-JAX reference mirroring torch.autograd.grad (full f32 path).
    scale = 1.0 / np.sqrt(H * W)

    def outputs_fn(s):
        fake = jnp.dot(s, gen_w, precision=jax.lax.Precision.HIGHEST)
        fake = fake.reshape(N, C, H, W)
        return jnp.sum(fake * (noise * scale))

    grads_ref = jax.grad(outputs_fn)(styles)
    pl_len_ref = jnp.sqrt(jnp.mean(jnp.sum(grads_ref ** 2, axis=-1)))
    ema_ref = decay * 0.0 + (1.0 - decay) * pl_len_ref
    penalty_ref = (pl_len_ref - ema_ref) ** 2

    assert jnp.allclose(grads, grads_ref, rtol=1e-3, atol=1e-5), "grads mismatch"
    assert jnp.allclose(penalty, penalty_ref, rtol=1e-3, atol=1e-6), "penalty mismatch"
    assert jnp.allclose(ema_new, ema_ref, rtol=1e-3, atol=1e-6), "ema mismatch"

    print("KERNEL_OK")
</pallas_src>

<mosaic_0001>
module attributes {stable_mosaic.version = 11 : i64} {
  func.func @kernel(%arg0: i32, %arg1: memref<8x256xf32, #tpu.memory_space<vmem>>, %arg2: memref<128x256xf32, #tpu.memory_space<vmem>>, %arg3: memref<8x128xf32, #tpu.memory_space<vmem>>) attributes {dimension_semantics = [#tpu.dimension_semantics<arbitrary>], iteration_bounds = array<i64: 4>, scalar_prefetch = 0 : i64, scratch_operands = 0 : i64, tpu.core_type = #tpu.core_type<tc>, window_params = [{transform_indices = @transform_0, window_bounds = array<i64: 8, 256>}, {transform_indices = @transform_1, window_bounds = array<i64: 128, 256>}, {pipeline_mode = #tpu.pipeline_mode<synchronous>, transform_indices = @transform_2, window_bounds = array<i64: 8, 128>}]} {
    %c0_i32 = arith.constant 0 : i32
    %0 = arith.cmpi eq, %arg0, %c0_i32 : i32
    %1 = arith.extui %0 : i1 to i32
    %c0_i32_0 = arith.constant 0 : i32
    %2 = arith.cmpi ne, %1, %c0_i32_0 : i32
    scf.if %2 {
      %cst_8 = arith.constant 0.000000e+00 : f32
      %9 = vector.broadcast %cst_8 : f32 to vector<8x128xf32>
      %c0_9 = arith.constant 0 : index
      %c0_10 = arith.constant 0 : index
      %10 = vector.load %arg3[%c0_9, %c0_10] : memref<8x128xf32, #tpu.memory_space<vmem>>, vector<8x128xf32>
      tpu.vector_store %arg3[%c0_9, %c0_10], %9 {strides = array<i32>} : memref<8x128xf32, #tpu.memory_space<vmem>>, vector<8x128xf32>,
    } else {
    }
    %c0 = arith.constant 0 : index
    %c0_1 = arith.constant 0 : index
    %3 = vector.load %arg3[%c0, %c0_1] : memref<8x128xf32, #tpu.memory_space<vmem>>, vector<8x128xf32>
    %c0_2 = arith.constant 0 : index
    %c0_3 = arith.constant 0 : index
    %4 = vector.load %arg1[%c0_2, %c0_3] : memref<8x256xf32, #tpu.memory_space<vmem>>, vector<8x256xf32>
    %c0_4 = arith.constant 0 : index
    %c0_5 = arith.constant 0 : index
    %5 = vector.load %arg2[%c0_4, %c0_5] : memref<128x256xf32, #tpu.memory_space<vmem>>, vector<128x256xf32>
    %cst = arith.constant dense<0.000000e+00> : vector<8x128xf32>
    %6 = tpu.matmul %4, %5, %cst {dimension_numbers = #tpu.dot_dimension_numbers<[1], [1], [0], [0], [0, 0, 1, 0], [], []>} : vector<8x256xf32>, vector<128x256xf32>, vector<8x128xf32> -> vector<8x128xf32>
    %7 = arith.addf %3, %6 : vector<8x128xf32>
    %c0_6 = arith.constant 0 : index
    %c0_7 = arith.constant 0 : index
    %8 = vector.load %arg3[%c0_6, %c0_7] : memref<8x128xf32, #tpu.memory_space<vmem>>, vector<8x128xf32>
    tpu.vector_store %arg3[%c0_6, %c0_7], %7 {strides = array<i32>} : memref<8x128xf32, #tpu.memory_space<vmem>>, vector<8x128xf32>,
    return
  }
  func.func @transform_0(%arg0: i32) -> (i32, i32) {
    %c0_i32 = arith.constant 0 : i32
    %c0_i32_0 = arith.constant 0 : i32
    return %c0_i32, %arg0 : i32, i32
  }
  func.func @transform_1(%arg0: i32) -> (i32, i32) {
    %c0_i32 = arith.constant 0 : i32
    %c0_i32_0 = arith.constant 0 : i32
    return %c0_i32, %arg0 : i32, i32
  }
  func.func @transform_2(%arg0: i32) -> (i32, i32) {
    %c0_i32 = arith.constant 0 : i32
    %c0_i32_0 = arith.constant 0 : i32
    %c0_i32_1 = arith.constant 0 : i32
    return %c0_i32, %c0_i32_0 : i32, i32
  }
}

</mosaic_0001>

<llo_original>
// kernel: tpu_custom_call.1
$region0: #{tpu_custom_call.1}
  #allocation0 [shape = 'u32[]', space=smem, size = 0x4, offset = 0x4, fixed_abs, tag = 'smem constant byte address 0x4 - core index']
  #allocation1 [shape = 'u32[144,128]{1,0:T(1,128)}', space=vmem, size = 0x12000, scoped, tag = 'internal scratch']
  %s0 = inlined_call_operand.hbm [shape: f32[8,1024], index: 0, kind: input, shape index: {}]
  %s1 = inlined_call_operand.hbm [shape: f32[128,1024], index: 1, kind: input, shape index: {}]
  %s2 = inlined_call_operand.hbm [shape: f32[8,128], index: 2, kind: output, shape index: {}]
  %s3 = sld [smem:[#allocation0]]
  $region53: #{tpu_custom_call.1} parent=0
    _
  %s5 = ssub.s32 1, %s3
  %s6 = scalar_select 0, %s5, %s3
  $region1: #{tpu_custom_call.1} parent=0
    #allocation2 [shape = 'u8[16384]{0}', space=vmem, size = 0x4000, scoped, tag = 'input window, operand 0']
    #allocation3 [shape = 's32[2]{0}', space=sflag, size = 0x8, scoped, tag = 'scoped memory for tpu_custom_call.1']
    #allocation4 [shape = 's32[2]{0}', space=sflag, size = 0x8, scoped, tag = 'scoped memory for tpu_custom_call.1']
    #allocation5 [shape = 'u8[262144]{0}', space=vmem, size = 0x40000, scoped, tag = 'input window, operand 1']
    #allocation6 [shape = 's32[2]{0}', space=sflag, size = 0x8, scoped, tag = 'scoped memory for tpu_custom_call.1']
    #allocation7 [shape = 'u8[4096]{0}', space=vmem, size = 0x1000, scoped, tag = 'output window, operand 0, single buffered']
    %7 = vsyncpa [#allocation3], 0
    %s8 = scalar_lea.sflag [#allocation3], 1
    %9 = vsyncpa %s8, 0
    %10 = vsyncpa [#allocation6], 0
    %s11 = scalar_lea.sflag [#allocation6], 1
    %12 = vsyncpa %s11, 0
    %13 = vsyncpa [#allocation4], 0
    loop: start=0, step=1, limit=6
    $region2: #{tpu_custom_call.1} parent=1 // loop_pre_header
      _
    $region3: #{tpu_custom_call.1} parent=1 // loop_header
      %s15 = sphi 0, %s19
      %p16 = scmp.ge.s32.totalorder %s15, 6
      %s25 = sphi 0, %s27
      %s28 = sphi 0, %s25
      %s29 = sphi 0, %s28
      %s45 = sphi 0, %s29
      %s51 = sphi 0, %s53
      %s54 = sphi 0, %s51
      %s55 = sphi 0, %s54
      %s71 = sphi 0, %s55
      %s75 = sphi 0, %s75
      %s77 = sphi 0, %s75
      %s78 = sphi 0, %s77
      %s92 = sphi 0, %s78
    $region4: #{tpu_custom_call.1} parent=1 // loop_header_branch
      %18 = sbr.rel (%p16) target = $region8
    $region5: #{tpu_custom_call.1} parent=1 // loop_body
      %s20 = ssub.s32 %s15, 1
      %s21 = ssub.s32 %s15, 2
      %s22 = sadd.s32 %s15, 1
      %s23 = ssub.s32 %s15, %s22
      %p24 = scmp.eq.s32.totalorder %s23, 0
      %s26 = sadd.s32 %s25, 1
      %s27 = scalar_select %p24, %s25, %s26
      %p30 = pneg %p24
      %p31 = scmp.eq.s32.totalorder %s15, 3
      %p32 = por %p30, %p31
      %p33 = scmp.ne.s32.totalorder %s25, %s28
      %p34 = scmp.eq.s32.totalorder %s15, 0
      %p35 = por %p33, %p34
      %p36 = scmp.ne.s32.totalorder %s25, %s28
      %p37 = scmp.eq.s32.totalorder %s20, 3
      %p38 = por %p36, %p37
      %p39 = scmp.ne.s32.totalorder %s28, %s29
      %p40 = scmp.eq.s32.totalorder %s20, 0
      %p41 = por %p39, %p40
      %p42 = scmp.ne.s32.totalorder %s28, %s29
      %p43 = scmp.eq.s32.totalorder %s21, 3
      %p44 = por %p42, %p43
      %p46 = scmp.ne.s32.totalorder %s29, %s45
      %p47 = scmp.eq.s32.totalorder %s21, 0
      %p48 = por %p46, %p47
      %s49 = ssub.s32 %s15, %s22
      %p50 = scmp.eq.s32.totalorder %s49, 0
      %s52 = sadd.s32 %s51, 1
      %s53 = scalar_select %p50, %s51, %s52
      %p56 = pneg %p50
      %p57 = scmp.eq.s32.totalorder %s15, 3
      %p58 = por %p56, %p57
      %p59 = scmp.ne.s32.totalorder %s51, %s54
      %p60 = scmp.eq.s32.totalorder %s15, 0
      %p61 = por %p59, %p60
      %p62 = scmp.ne.s32.totalorder %s51, %s54
      %p63 = scmp.eq.s32.totalorder %s20, 3
      %p64 = por %p62, %p63
      %p65 = scmp.ne.s32.totalorder %s54, %s55
      %p66 = scmp.eq.s32.totalorder %s20, 0
      %p67 = por %p65, %p66
      %p68 = scmp.ne.s32.totalorder %s54, %s55
      %p69 = scmp.eq.s32.totalorder %s21, 3
      %p70 = por %p68, %p69
      %p72 = scmp.ne.s32.totalorder %s55, %s71
      %p73 = scmp.eq.s32.totalorder %s21, 0
      %p74 = por %p72, %p73
      %s76 = sadd.s32 %s75, 1
      %p79 = scmp.eq.s32.totalorder %s15, 3
      %p80 = scmp.ne.s32.totalorder %s75, %s77
      %p81 = scmp.eq.s32.totalorder %s15, 0
      %p82 = por %p80, %p81
      %p83 = scmp.ne.s32.totalorder %s75, %s77
      %p84 = scmp.eq.s32.totalorder %s20, 3
      %p85 = por %p83, %p84
      %p86 = scmp.ne.s32.totalorder %s77, %s78
      %p87 = scmp.eq.s32.totalorder %s20, 0
      %p88 = por %p86, %p87
      %p89 = scmp.ne.s32.totalorder %s77, %s78
      %p90 = scmp.eq.s32.totalorder %s21, 3
      %p91 = por %p89, %p90
      %p93 = scmp.ne.s32.totalorder %s78, %s92
      %p94 = scmp.eq.s32.totalorder %s21, 0
      %p95 = por %p93, %p94
      %p96 = scmp.le.s32.totalorder 1, %s15
      %p97 = scmp.lt.s32.totalorder %s15, 5
      %p98 = pnand %p96, %p97
      %p99 = pneg %p98
      // Predicated region
      $region9: #{tpu_custom_call.1} parent=5 // pred_check
        _
      $region10: #{tpu_custom_call.1} parent=5 // pred_check_branch
        %101 = sbr.rel (%p98) target = $region12
      $region11: #{tpu_custom_call.1} parent=5 // pred_region
        %s102 = ssub.s32 %s15, 1
      $region12: #{tpu_custom_call.1} parent=5 // pred_fallthru
        _
      %p103 = scmp.lt.s32.totalorder %s15, 4
      // Predicated region
      $region13: #{tpu_custom_call.1} parent=5 // pred_check
        %p104 = pneg %p103
      $region14: #{tpu_custom_call.1} parent=5 // pred_check_branch
        %106 = sbr.rel (%p104) target = $region16
      $region15: #{tpu_custom_call.1} parent=5 // pred_region
        // Predicated region
        $region17: #{tpu_custom_call.1} parent=15 // pred_check
          %p107 = pneg %p35
        $region18: #{tpu_custom_call.1} parent=15 // pred_check_branch
          %109 = sbr.rel (%p107) target = $region20
        $region19: #{tpu_custom_call.1} parent=15 // pred_region
          %s110 = sand.u32 %s25, 1
          %s111 = scalar_lea.sflag [#allocation3], %s110
          %s112 = sand.u32 %s25, 1
          %s113 = smul.addr %s112, 16
          %s114 = scalar_lea.vmem [#allocation2], %s113
          %s115 = smul.u32 2, %s15
          %s117 = ssub.s32 256, 256
          %118 = vsyncadd %s111, %s117
          %s119 = smul.addr %s115, 128
          %s120 = scalar_lea.hbm %s0, %s119
          %s122 = sshll.u32 %s114, 4
          %s123 = int_to_ptr.vmem [resolvable:$true] %s122
          %125 = dma.hbm_to_vmem [thread:$0]  %s120, 256, %s123, %s111
        $region20: #{tpu_custom_call.1} parent=15 // pred_fallthru
          _
        // Predicated region
        $region21: #{tpu_custom_call.1} parent=15 // pred_check
          %p126 = pneg %p61
        $region22: #{tpu_custom_call.1} parent=15 // pred_check_branch
          %128 = sbr.rel (%p126) target = $region24
        $region23: #{tpu_custom_call.1} parent=15 // pred_region
          %s129 = sand.u32 %s51, 1
          %s130 = scalar_lea.sflag [#allocation6], %s129
          %s131 = sand.u32 %s51, 1
          %s132 = smul.addr %s131, 256
          %s133 = scalar_lea.vmem [#allocation5], %s132
          %s134 = smul.u32 2, %s15
          %s136 = ssub.s32 4096, 4096
          %137 = vsyncadd %s130, %s136
          %s138 = smul.addr %s134, 128
          %s139 = scalar_lea.hbm %s1, %s138
          %s140 = sshll.u32 %s133, 4
          %s141 = int_to_ptr.vmem [resolvable:$true] %s140
          %146 = dma.hbm_to_vmem [thread:$0]  %s139, 4096, %s141, %s130, 1024, 256, 16
        $region24: #{tpu_custom_call.1} parent=15 // pred_fallthru
          _
      $region16: #{tpu_custom_call.1} parent=5 // pred_fallthru
        _
      %p147 = scmp.le.s32.totalorder 1, %s15
      %p148 = scmp.lt.s32.totalorder %s15, 5
      %p149 = pnand %p147, %p148
      %p150 = pneg %p149
      // Predicated region
      $region25: #{tpu_custom_call.1} parent=5 // pred_check
        _
      $region26: #{tpu_custom_call.1} parent=5 // pred_check_branch
        %152 = sbr.rel (%p149) target = $region28
      $region27: #{tpu_custom_call.1} parent=5 // pred_region
        %s153 = ssub.s32 %s15, 1
        %s154 = sand.u32 %s28, 1
        %s155 = scalar_lea.sflag [#allocation3], %s154
        %s156 = sand.u32 %s28, 1
        %s157 = smul.addr %s156, 16
        %s158 = scalar_lea.vmem [#allocation2], %s157
        // Predicated region
        $region29: #{tpu_custom_call.1} parent=27 // pred_check
          %p159 = pneg %p41
        $region30: #{tpu_custom_call.1} parent=27 // pred_check_branch
          %161 = sbr.rel (%p159) target = $region32
        $region31: #{tpu_custom_call.1} parent=27 // pred_region
          %162 = dma.done %s155, 256
        $region32: #{tpu_custom_call.1} parent=27 // pred_fallthru
          _
        %s163 = sand.u32 %s54, 1
        %s164 = scalar_lea.sflag [#allocation6], %s163
        %s165 = sand.u32 %s54, 1
        %s166 = smul.addr %s165, 256
        %s167 = scalar_lea.vmem [#allocation5], %s166
        // Predicated region
        $region33: #{tpu_custom_call.1} parent=27 // pred_check
          %p168 = pneg %p67
        $region34: #{tpu_custom_call.1} parent=27 // pred_check_branch
          %170 = sbr.rel (%p168) target = $region36
        $region35: #{tpu_custom_call.1} parent=27 // pred_region
          %171 = dma.done %s164, 4096
        $region36: #{tpu_custom_call.1} parent=27 // pred_fallthru
          _
        %s172 = sand.u32 %s28, 1
        %s173 = scalar_lea.sflag [#allocation3], %s172
        %s174 = sand.u32 %s28, 1
        %s175 = smul.addr %s174, 16
        %s176 = scalar_lea.vmem [#allocation2], %s175
        %p177 = pneg %p41
        %p178 = pneg %p38
        %s179 = sand.u32 %s54, 1
        %s180 = scalar_lea.sflag [#allocation6], %s179
        %s181 = sand.u32 %s54, 1
        %s182 = smul.addr %s181, 256
        %s183 = scalar_lea.vmem [#allocation5], %s182
        %p184 = pneg %p67
        %p185 = pneg %p64
        %p186 = pneg %p88
        %p187 = pneg %p85
        %s188 = smul.u32 2, %s20
        %s189 = smul.u32 2, %s20
        %p190 = scmp.eq.s32.totalorder %s20, 0
        // Predicated region
        $region37: #{tpu_custom_call.1} parent=27 // pred_check
          %p191 = pneg %p190
        $region38: #{tpu_custom_call.1} parent=27 // pred_check_branch
          %193 = sbr.rel (%p191) target = $region40
        $region39: #{tpu_custom_call.1} parent=27 // pred_region
          %194 = vst [vmem:[#allocation7] sm:$0xff] 0.0
        $region40: #{tpu_custom_call.1} parent=27 // pred_fallthru
          _
        %v195 = vld [vmem:[#allocation7] sm:$0xff]
        %v196 = vld [vmem:[%s158] sm:$0xff]
        %v197 = vld [vmem:[%s158 + $0x8] sm:$0xff]
        %v198 = vld [vmem:[%s167] sm:$0xff]
        %v199 = vld [vmem:[%s167 + $0x8] sm:$0xff]
        %v200 = vld [vmem:[%s167 + $0x10] sm:$0xff]
        %v201 = vld [vmem:[%s167 + $0x18] sm:$0xff]
        %v202 = vld [vmem:[%s167 + $0x20] sm:$0xff]
        %v203 = vld [vmem:[%s167 + $0x28] sm:$0xff]
        %v204 = vld [vmem:[%s167 + $0x30] sm:$0xff]
        %v205 = vld [vmem:[%s167 + $0x38] sm:$0xff]
        %v206 = vld [vmem:[%s167 + $0x40] sm:$0xff]
        %v207 = vld [vmem:[%s167 + $0x48] sm:$0xff]
        %v208 = vld [vmem:[%s167 + $0x50] sm:$0xff]
        %v209 = vld [vmem:[%s167 + $0x58] sm:$0xff]
        %v210 = vld [vmem:[%s167 + $0x60] sm:$0xff]
        %v211 = vld [vmem:[%s167 + $0x68] sm:$0xff]
        %v212 = vld [vmem:[%s167 + $0x70] sm:$0xff]
        %v213 = vld [vmem:[%s167 + $0x78] sm:$0xff]
        %v214 = vld [vmem:[%s167 + $0x80] sm:$0xff]
        %v215 = vld [vmem:[%s167 + $0x88] sm:$0xff]
        %v216 = vld [vmem:[%s167 + $0x90] sm:$0xff]
        %v217 = vld [vmem:[%s167 + $0x98] sm:$0xff]
        %v218 = vld [vmem:[%s167 + $0xa0] sm:$0xff]
        %v219 = vld [vmem:[%s167 + $0xa8] sm:$0xff]
        %v220 = vld [vmem:[%s167 + $0xb0] sm:$0xff]
        %v221 = vld [vmem:[%s167 + $0xb8] sm:$0xff]
        %v222 = vld [vmem:[%s167 + $0xc0] sm:$0xff]
        %v223 = vld [vmem:[%s167 + $0xc8] sm:$0xff]
        %v224 = vld [vmem:[%s167 + $0xd0] sm:$0xff]
        %v225 = vld [vmem:[%s167 + $0xd8] sm:$0xff]
        %v226 = vld [vmem:[%s167 + $0xe0] sm:$0xff]
        %v227 = vld [vmem:[%s167 + $0xe8] sm:$0xff]
        %v228 = vld [vmem:[%s167 + $0xf0] sm:$0xff]
        %v229 = vld [vmem:[%s167 + $0xf8] sm:$0xff]
        %230 = vmatprep.subr.mxu0 %v199
        %231 = vmatpush1.xpose.msra.mxu0 %v198
        %232 = vmatprep.subr.mxu0 %v201
        %233 = vmatpush1.xpose.msra.mxu0 %v200
        %234 = vmatprep.subr.mxu0 %v203
        %235 = vmatpush1.xpose.msra.mxu0 %v202
        %236 = vmatprep.subr.mxu0 %v205
        %237 = vmatpush1.xpose.msra.mxu0 %v204
        %238 = vmatprep.subr.mxu0 %v207
        %239 = vmatpush1.xpose.msra.mxu0 %v206
        %240 = vmatprep.subr.mxu0 %v209
        %241 = vmatpush1.xpose.msra.mxu0 %v208
        %242 = vmatprep.subr.mxu0 %v211
        %243 = vmatpush1.xpose.msra.mxu0 %v210
        %244 = vmatprep.subr.mxu0 %v213
        %245 = vmatpush1.xpose.msra.mxu0 %v212
        %246 = vmatprep.subr.mxu0 %v215
        %247 = vmatpush1.xpose.msra.mxu0 %v214
        %248 = vmatprep.subr.mxu0 %v217
        %249 = vmatpush1.xpose.msra.mxu0 %v216
        %250 = vmatprep.subr.mxu0 %v219
        %251 = vmatpush1.xpose.msra.mxu0 %v218
        %252 = vmatprep.subr.mxu0 %v221
        %253 = vmatpush1.xpose.msra.mxu0 %v220
        %254 = vmatprep.subr.mxu0 %v223
        %255 = vmatpush1.xpose.msra.mxu0 %v222
        %256 = vmatprep.subr.mxu0 %v225
        %257 = vmatpush1.xpose.msra.mxu0 %v224
        %258 = vmatprep.subr.mxu0 %v227
        %259 = vmatpush1.xpose.msra.mxu0 %v226
        %260 = vmatprep.subr.mxu0 %v229
        %261 = vmatpush1.xpose.msra.mxu0 %v228
        %262 = vmatprep.subr.mxu0 0.0
        %263 = vmatpush1.xpose.msra.mxu0 0.0
        %264 = vmatprep.subr.mxu0 0.0
        %265 = vmatpush1.xpose.msra.mxu0 0.0
        %266 = vmatprep.subr.mxu0 0.0
        %267 = vmatpush1.xpose.msra.mxu0 0.0
        %268 = vmatprep.subr.mxu0 0.0
        %269 = vmatpush1.xpose.msra.mxu0 0.0
        %270 = vmatprep.subr.mxu0 0.0
        %271 = vmatpush1.xpose.msra.mxu0 0.0
        %272 = vmatprep.subr.mxu0 0.0
        %273 = vmatpush1.xpose.msra.mxu0 0.0
        %274 = vmatprep.subr.mxu0 0.0
        %275 = vmatpush1.xpose.msra.mxu0 0.0
        %276 = vmatprep.subr.mxu0 0.0
        %277 = vmatpush1.xpose.msra.mxu0 0.0
        %278 = vmatprep.subr.mxu0 0.0
        %279 = vmatpush1.xpose.msra.mxu0 0.0
        %280 = vmatprep.subr.mxu0 0.0
        %281 = vmatpush1.xpose.msra.mxu0 0.0
        %282 = vmatprep.subr.mxu0 0.0
        %283 = vmatpush1.xpose.msra.mxu0 0.0
        %284 = vmatprep.subr.mxu0 0.0
        %285 = vmatpush1.xpose.msra.mxu0 0.0
        %286 = vmatprep.subr.mxu0 0.0
        %287 = vmatpush1.xpose.msra.mxu0 0.0
        %288 = vmatprep.subr.mxu0 0.0
        %289 = vmatpush1.xpose.msra.mxu0 0.0
        %290 = vmatprep.subr.mxu0 0.0
        %291 = vmatpush1.xpose.msra.mxu0 0.0
        %292 = vmatprep.subr.mxu0 0.0
        %293 = vmatpush1.xpose.msra.mxu0 0.0
        %294 = vmatprep.mubr.f32.mxu0 %v197
        %295 = vmatmul.mubr.f32.gmra.mrb[0].mxu0 %v196
        %v296 = vpop.f32.mrb[0].mxu0
        %v297 = vadd.f32 0.0, %v296
        %v298 = vpop.f32.mrb[0].mxu0
        %299 = vdwg.mxu0
        %v300 = vadd.f32 %v195, %v297
        %301 = vst [vmem:[#allocation7] sm:$0xff] %v300
        // Predicated region
        $region41: #{tpu_custom_call.1} parent=27 // pred_check
          %p302 = pneg %p85
        $region42: #{tpu_custom_call.1} parent=27 // pred_check_branch
          %304 = sbr.rel (%p302) target = $region44
        $region43: #{tpu_custom_call.1} parent=27 // pred_region
          %s306 = ssub.s32 128, 128
          %307 = vsyncadd [#allocation4], %s306
          %s309 = sshll.u32 [#allocation7], 4
          %s310 = int_to_ptr.vmem [resolvable:$true] %s309
          %312 = dma.vmem_to_hbm [thread:$0]  %s310, 128, %s2, [#allocation4]
        $region44: #{tpu_custom_call.1} parent=27 // pred_fallthru
          _
        // Predicated region
        $region45: #{tpu_custom_call.1} parent=27 // pred_check
          %p313 = pneg %p85
        $region46: #{tpu_custom_call.1} parent=27 // pred_check_branch
          %315 = sbr.rel (%p313) target = $region48
        $region47: #{tpu_custom_call.1} parent=27 // pred_region
          %316 = dma.done [#allocation4], 128
        $region48: #{tpu_custom_call.1} parent=27 // pred_fallthru
          _
      $region28: #{tpu_custom_call.1} parent=5 // pred_fallthru
        _
      %p317 = scmp.le.s32.totalorder 2, %s15
      // Predicated region
      $region49: #{tpu_custom_call.1} parent=5 // pred_check
        %p318 = pneg %p317
      $region50: #{tpu_custom_call.1} parent=5 // pred_check_branch
        %320 = sbr.rel (%p318) target = $region52
      $region51: #{tpu_custom_call.1} parent=5 // pred_region
        %s321 = ssub.s32 %s15, 2
      $region52: #{tpu_custom_call.1} parent=5 // pred_fallthru
        _
    $region6: #{tpu_custom_call.1} parent=1 // loop_footer
      %s19 = sadd.s32 1, %s15
    $region7: #{tpu_custom_call.1} parent=1 // loop_footer_branch
      %14 = sbr.rel target = $region3
    $region8: #{tpu_custom_call.1} parent=1 // loop_exit
      _
    %322 = vsyncpa [#allocation3], 1
    %s323 = scalar_lea.sflag [#allocation3], 1
    %324 = vsyncpa %s323, 1
    %325 = vsyncpa [#allocation6], 1
    %s326 = scalar_lea.sflag [#allocation6], 1
    %327 = vsyncpa %s326, 1
    %328 = vsyncpa [#allocation4], 1
    %s329 = scalar_lea.sflag [#allocation4], 1
    %330 = vsyncpa %s329, 1

</llo_original>
